<compile_context>
chip_gen: v7x
topology: tpu7x:2x2x1
jax: 0.10.0
libtpu: 0.0.40
codegen_flags: <defaults>
</compile_context>

<pallas_src>
import functools
import math
from typing import Any, NamedTuple, Optional

import jax
import jax.numpy as jnp
import numpy as np
from jax.experimental import pallas as pl
from jax.experimental.pallas import tpu as pltpu


def _round_up(v: int, m: int) -> int:
    return ((v + m - 1) // m) * m


def _vmem_cap_bytes() -> int:
    """~75% of physical VMEM (128 MiB on v5e/v6e, 64 MiB on v7x)."""
    try:
        phys = pltpu.get_tpu_info().vmem_capacity_bytes
    except Exception:
        phys = 64 * 1024 * 1024  # v7x-safe fallback
    return int(phys) * 3 // 4


def _linear_gramo_kernel(x_ref, wt_ref, b_ref, o_ref, acc_ref, *, precision):
    # grid = (n, m, k); k (reduction) is innermost so the accumulator and the
    # output block stay resident across the K sweep.
    k = pl.program_id(2)

    @pl.when(k == 0)
    def _init():
        # Fold the bias into the accumulator init: no per-step epilogue add.
        acc_ref[...] = jnp.broadcast_to(b_ref[...], acc_ref.shape)

    # Clean [tm,tk] @ [tk,tn] MXU matmul (weight pre-transposed to [IN,OUT]).
    # Accumulate in f32; precision=HIGHEST only on the strict-f32 parity path.
    acc_ref[...] += jax.lax.dot_general(
        x_ref[...], wt_ref[...],
        dimension_numbers=(((1,), (0,)), ((), ())),
        preferred_element_type=jnp.float32,
        precision=precision,
    )

    @pl.when(k == pl.num_programs(2) - 1)
    def _writeback():
        o_ref[...] = acc_ref[...].astype(o_ref.dtype)


class LinearGramoParams(NamedTuple):
    wt_p: jax.Array          # [k_p, n_p] pre-transposed, padded, MXU dtype
    b_p: jax.Array           # [1, n_p] f32
    in_features: int
    out_features: int
    tk: int
    tn: int
    mxu_dtype: Any
    strict_f32: bool


def prepare_linear_gramo(weight, bias: Optional[jax.Array] = None, *,
                         use_bf16_mxu: bool = True,
                         tk: Optional[int] = None,
                         tn: int = 256) -> LinearGramoParams:
    """One-time weight/bias prep: transpose -> [IN,OUT], pad, cast.

    weight: [out_features, in_features]  (torch.nn.Linear layout)
    bias:   [out_features] or None
    """
    out_features, in_features = weight.shape
    strict_f32 = not use_bf16_mxu
    mxu_dtype = jnp.bfloat16 if use_bf16_mxu else jnp.float32

    if tk is None:
        tk = 1024 if use_bf16_mxu else 512
    # tk/tn multiples of 128 (lane-dense loads, unmasked stores); clamp so
    # small feature dims don't over-pad.
    tk = min(tk, _round_up(in_features, 128))
    tn = min(tn, _round_up(out_features, 128))
    k_p = _round_up(in_features, tk)
    n_p = _round_up(out_features, tn)

    wt_p = jnp.asarray(weight).T.astype(mxu_dtype)          # [IN, OUT]
    if wt_p.shape != (k_p, n_p):
        wt_p = jax.lax.pad(
            wt_p, jnp.zeros((), mxu_dtype),
            ((0, k_p - in_features, 0), (0, n_p - out_features, 0)))

    if bias is None:
        b_p = jnp.zeros((1, n_p), jnp.float32)
    else:
        b_p = jnp.asarray(bias, jnp.float32).reshape(1, out_features)
        if n_p != out_features:
            b_p = jax.lax.pad(b_p, jnp.zeros((), jnp.float32),
                              ((0, 0, 0), (0, n_p - out_features, 0)))

    # Materialize once so every forward reuses the HBM-resident prepped buffers.
    wt_p = jax.block_until_ready(wt_p)
    b_p = jax.block_until_ready(b_p)

    return LinearGramoParams(wt_p, b_p, in_features, out_features,
                             tk, tn, mxu_dtype, strict_f32)


def linear_gramo_forward(x, params: LinearGramoParams, *,
                         tm: int = 1024,
                         min_macs_for_kernel: int = 128 * 128 * 128):
    """Forward pass of Linear_gramo (gramo is identity in forward).

    x: [batch, in_features] -> [batch, out_features]
    """
    # TODO(synk): GradientModification's backward (per-row L2 gradient renorm
    # with epi / div_me_when_g_too_small / scaling_ratio) is an autograd rule,
    # not forward compute; in JAX it belongs in a jax.custom_vjp around this
    # forward, not in the kernel.
    assert x.ndim == 2, "Linear_gramo only accepts rank-2 input [batch, features]"
    batch, in_features = x.shape
    assert in_features == params.in_features
    out_features = params.out_features
    out_dtype = x.dtype
    mxu_dtype = params.mxu_dtype
    precision = jax.lax.Precision.HIGHEST if params.strict_f32 else None

    k_p, n_p = params.wt_p.shape

    # Genuinely tiny problems are pure launch/grid overhead in a custom kernel:
    # let XLA handle them, with the SAME operand dtype/precision as the kernel.
    if batch * in_features * out_features < min_macs_for_kernel:
        out = jnp.dot(x.astype(mxu_dtype),
                      params.wt_p[:in_features, :out_features],
                      preferred_element_type=jnp.float32,
                      precision=precision)
        out = out + params.b_p[0, :out_features]
        return out.astype(out_dtype)

    tk, tn = params.tk, params.tn

    # Grow tm toward the full padded batch: weight HBM traffic is
    # K*N*(m_p/tm) bytes, so fewer M blocks == fewer weight re-streams.
    tm = min(tm, _round_up(batch, 16))
    m_p = _round_up(batch, tm)

    # v7x has 2 TensorCores: make sure the parallel axes expose >= 2 blocks
    # when that is free (prefer more N blocks; halving keeps n_p % tn == 0).
    if (m_p // tm) * (n_p // tn) < 2 and tn % 256 == 0:
        tn //= 2

    op_bytes = np.dtype(mxu_dtype).itemsize
    out_bytes = np.dtype(out_dtype).itemsize

    def est_vmem(tm_, tk_, tn_):
        return (2 * tm_ * tk_ * op_bytes        # x tiles, double-buffered
                + 2 * tk_ * tn_ * op_bytes       # W.T tiles, double-buffered
                + 2 * tm_ * tn_ * out_bytes      # output tiles, double-buffered
                + tm_ * tn_ * 4                  # f32 accumulator scratch
                + 2 * tn_ * 4)                   # bias tiles

    vmem_cap = _vmem_cap_bytes()
    # Shrink (tk first, then tm) if the chosen tiles would not fit; halving
    # preserves divisibility of the already-padded k_p / m_p.
    while est_vmem(tm, tk, tn) > vmem_cap and tk >= 512 and (tk // 2) % 128 == 0:
        tk //= 2
    while est_vmem(tm, tk, tn) > vmem_cap and tm >= 512 and (tm // 2) % 16 == 0:
        tm //= 2
    vmem_limit = int(min(vmem_cap,
                         max(32 * 1024 * 1024,
                             2 * est_vmem(tm, tk, tn) + (4 << 20))))

    # Pad / cast x only when actually needed (aligned f32->f32 is a no-op).
    x_p = x.astype(mxu_dtype)
    if x_p.shape != (m_p, k_p):
        x_p = jax.lax.pad(x_p, jnp.zeros((), mxu_dtype),
                          ((0, m_p - batch, 0), (0, k_p - in_features, 0)))

    # N outer, M middle, K innermost: the (k, j) weight tile is independent of
    # the M sweep, and K-innermost keeps the accumulator resident.
    grid = (n_p // tn, m_p // tm, k_p // tk)
    kernel = functools.partial(_linear_gramo_kernel, precision=precision)

    out_p = pl.pallas_call(
        kernel,
        out_shape=jax.ShapeDtypeStruct((m_p, n_p), out_dtype),
        grid_spec=pltpu.PrefetchScalarGridSpec(
            num_scalar_prefetch=0,
            grid=grid,
            in_specs=[
                pl.BlockSpec((tm, tk), lambda j, i, k: (i, k)),   # x tile
                pl.BlockSpec((tk, tn), lambda j, i, k: (k, j)),   # W.T tile
                pl.BlockSpec((1, tn), lambda j, i, k: (0, j)),    # bias tile
            ],
            out_specs=pl.BlockSpec((tm, tn), lambda j, i, k: (i, j)),
            scratch_shapes=[pltpu.VMEM((tm, tn), jnp.float32)],
        ),
        compiler_params=pltpu.CompilerParams(
            dimension_semantics=("parallel", "parallel", "arbitrary"),
            vmem_limit_bytes=vmem_limit,
        ),
    )(x_p, params.wt_p, params.b_p)

    if (m_p, n_p) != (batch, out_features):
        return out_p[:batch, :out_features]
    return out_p


if __name__ == "__main__":
    # Small but non-tile-aligned shapes: exercises K/N padding, the "need >=2
    # parallel blocks" tn halving, and the padded lane-dense output store.
    batch = 160
    in_features = 320
    out_features = 200

    key = jax.random.PRNGKey(0)
    kx, kw, kb = jax.random.split(key, 3)

    # torch.nn.Linear-style init: U(-1/sqrt(in), +1/sqrt(in)).
    bound = 1.0 / math.sqrt(in_features)
    weight = jax.random.uniform(
        kw, (out_features, in_features), jnp.float32, minval=-bound, maxval=bound)
    bias = jax.random.uniform(
        kb, (out_features,), jnp.float32, minval=-bound, maxval=bound)
    x = jax.random.normal(kx, (batch, in_features), jnp.float32)

    # Default fast path: bf16 MXU operands, f32 accumulation (prepped once).
    params_fast = prepare_linear_gramo(weight, bias)
    out_fast = jax.block_until_ready(linear_gramo_forward(x, params_fast))

    # Strict-parity path: f32 operands at Precision.HIGHEST.
    params_exact = prepare_linear_gramo(weight, bias, use_bf16_mxu=False)
    out_exact = jax.block_until_ready(linear_gramo_forward(x, params_exact))

    # Pure-JAX reference (highest precision) for the forward semantics.
    ref = jax.lax.dot_general(
        x, weight,
        dimension_numbers=(((1,), (1,)), ((), ())),
        precision=jax.lax.Precision.HIGHEST,
        preferred_element_type=jnp.float32,
    ) + bias

    assert out_fast.shape == (batch, out_features)
    assert out_exact.shape == (batch, out_features)
    assert jnp.allclose(out_exact, ref, atol=1e-4, rtol=1e-4), \
        "strict f32 path mismatch vs reference"
    assert jnp.allclose(out_fast, ref, atol=2.5e-2, rtol=2.5e-2), \
        "bf16 MXU path mismatch vs reference"

    print("KERNEL_OK")
</pallas_src>

<mosaic_0001>
module attributes {stable_mosaic.version = 11 : i64} {
  func.func @_linear_gramo_kernel(%arg0: i32, %arg1: i32, %arg2: i32, %arg3: memref<160x384xbf16, #tpu.memory_space<vmem>>, %arg4: memref<384x128xbf16, #tpu.memory_space<vmem>>, %arg5: memref<1x128xf32, #tpu.memory_space<vmem>>, %arg6: memref<160x128xf32, #tpu.memory_space<vmem>>, %arg7: memref<160x128xf32, #tpu.memory_space<vmem>>) attributes {dimension_semantics = [#tpu.dimension_semantics<parallel>, #tpu.dimension_semantics<parallel>, #tpu.dimension_semantics<arbitrary>], iteration_bounds = array<i64: 2, 1, 1>, scalar_prefetch = 0 : i64, scratch_operands = 1 : i64, tpu.core_type = #tpu.core_type<tc>, window_params = [{transform_indices = @transform_0, window_bounds = array<i64: 160, 384>}, {transform_indices = @transform_1, window_bounds = array<i64: 384, 128>}, {transform_indices = @transform_2, window_bounds = array<i64: 1, 128>}, {transform_indices = @transform_3, window_bounds = array<i64: 160, 128>}]} {
    %c0_i32 = arith.constant 0 : i32
    %0 = arith.cmpi eq, %arg2, %c0_i32 : i32
    %1 = arith.extui %0 : i1 to i32
    %c0_i32_0 = arith.constant 0 : i32
    %2 = arith.cmpi ne, %1, %c0_i32_0 : i32
    scf.if %2 {
      %c0_10 = arith.constant 0 : index
      %c0_11 = arith.constant 0 : index
      %12 = vector.load %arg5[%c0_10, %c0_11] : memref<1x128xf32, #tpu.memory_space<vmem>>, vector<1x128xf32>
      %13 = vector.shape_cast %12 : vector<1x128xf32> to vector<1x128xf32>
      %14 = vector.broadcast %13 : vector<1x128xf32> to vector<160x128xf32>
      %c0_12 = arith.constant 0 : index
      %c0_13 = arith.constant 0 : index
      %15 = vector.load %arg7[%c0_12, %c0_13] : memref<160x128xf32, #tpu.memory_space<vmem>>, vector<160x128xf32>
      tpu.vector_store %arg7[%c0_12, %c0_13], %14 {strides = array<i32>} : memref<160x128xf32, #tpu.memory_space<vmem>>, vector<160x128xf32>,
    } else {
    }
    %c0 = arith.constant 0 : index
    %c0_1 = arith.constant 0 : index
    %3 = vector.load %arg7[%c0, %c0_1] : memref<160x128xf32, #tpu.memory_space<vmem>>, vector<160x128xf32>
    %c0_2 = arith.constant 0 : index
    %c0_3 = arith.constant 0 : index
    %4 = vector.load %arg3[%c0_2, %c0_3] : memref<160x384xbf16, #tpu.memory_space<vmem>>, vector<160x384xbf16>
    %c0_4 = arith.constant 0 : index
    %c0_5 = arith.constant 0 : index
    %5 = vector.load %arg4[%c0_4, %c0_5] : memref<384x128xbf16, #tpu.memory_space<vmem>>, vector<384x128xbf16>
    %cst = arith.constant dense<0.000000e+00> : vector<160x128xf32>
    %6 = tpu.matmul %4, %5, %cst {dimension_numbers = #tpu.dot_dimension_numbers<[1], [0], [0], [1], [0, 0, 1, 1], [], []>} : vector<160x384xbf16>, vector<384x128xbf16>, vector<160x128xf32> -> vector<160x128xf32>
    %7 = arith.addf %3, %6 : vector<160x128xf32>
    %c0_6 = arith.constant 0 : index
    %c0_7 = arith.constant 0 : index
    %8 = vector.load %arg7[%c0_6, %c0_7] : memref<160x128xf32, #tpu.memory_space<vmem>>, vector<160x128xf32>
    tpu.vector_store %arg7[%c0_6, %c0_7], %7 {strides = array<i32>} : memref<160x128xf32, #tpu.memory_space<vmem>>, vector<160x128xf32>,
    %c0_i32_8 = arith.constant 0 : i32
    %9 = arith.cmpi eq, %arg2, %c0_i32_8 : i32
    %10 = arith.extui %9 : i1 to i32
    %c0_i32_9 = arith.constant 0 : i32
    %11 = arith.cmpi ne, %10, %c0_i32_9 : i32
    scf.if %11 {
      %c0_10 = arith.constant 0 : index
      %c0_11 = arith.constant 0 : index
      %12 = vector.load %arg7[%c0_10, %c0_11] : memref<160x128xf32, #tpu.memory_space<vmem>>, vector<160x128xf32>
      %c0_12 = arith.constant 0 : index
      %c0_13 = arith.constant 0 : index
      %13 = vector.load %arg6[%c0_12, %c0_13] : memref<160x128xf32, #tpu.memory_space<vmem>>, vector<160x128xf32>
      tpu.vector_store %arg6[%c0_12, %c0_13], %12 {strides = array<i32>} : memref<160x128xf32, #tpu.memory_space<vmem>>, vector<160x128xf32>,
    } else {
    }
    return
  }
  func.func @transform_0(%arg0: i32, %arg1: i32, %arg2: i32) -> (i32, i32) {
    %c0_i32 = arith.constant 0 : i32
    return %arg1, %arg2 : i32, i32
  }
  func.func @transform_1(%arg0: i32, %arg1: i32, %arg2: i32) -> (i32, i32) {
    %c0_i32 = arith.constant 0 : i32
    return %arg2, %arg0 : i32, i32
  }
  func.func @transform_2(%arg0: i32, %arg1: i32, %arg2: i32) -> (i32, i32) {
    %c0_i32 = arith.constant 0 : i32
    %c0_i32_0 = arith.constant 0 : i32
    return %c0_i32, %arg0 : i32, i32
  }
  func.func @transform_3(%arg0: i32, %arg1: i32, %arg2: i32) -> (i32, i32) {
    %c0_i32 = arith.constant 0 : i32
    return %arg1, %arg0 : i32, i32
  }
}

</mosaic_0001>

<llo_original>
// kernel: tpu_custom_call.1
$region0: #{tpu_custom_call.1}
  #allocation0 [shape = 'u32[]', space=smem, size = 0x4, offset = 0x4, fixed_abs, tag = 'smem constant byte address 0x4 - core index']
  #allocation1 [shape = 'u32[144,128]{1,0:T(1,128)}', space=vmem, size = 0x12000, scoped, tag = 'internal scratch']
  #allocation2 [shape = 'f32[160,128]{1,0:T(8,128)}', space=vmem, size = 0x14000, scoped, tag = 'scratch operand']
  %s0 = inlined_call_operand.hbm [shape: bf16[160,384], index: 0, kind: input, shape index: {}]
  %s1 = inlined_call_operand.hbm [shape: bf16[384,256], index: 1, kind: input, shape index: {}]
  %s2 = inlined_call_operand.vmem [shape: f32[1,256], index: 2, kind: input, shape index: {}]
  %s3 = inlined_call_operand.hbm [shape: f32[160,256], index: 3, kind: output, shape index: {}]
  %s4 = sld [smem:[#allocation0]]
  $region61: #{tpu_custom_call.1} parent=0
    _
  %s6 = ssub.s32 1, %s4
  %s7 = scalar_select 0, %s6, %s4
  $region1: #{tpu_custom_call.1} parent=0
    #allocation3 [shape = 'u8[122880]{0}', space=vmem, size = 0x1e000, scoped, tag = 'input window, operand 0, single buffered']
    #allocation4 [shape = 's32[2]{0}', space=sflag, size = 0x8, scoped, tag = 'scoped memory for tpu_custom_call.1']
    #allocation5 [shape = 's32[2]{0}', space=sflag, size = 0x8, scoped, tag = 'scoped memory for tpu_custom_call.1']
    #allocation6 [shape = 'u8[196608]{0}', space=vmem, size = 0x30000, scoped, tag = 'input window, operand 1']
    #allocation7 [shape = 's32[2]{0}', space=sflag, size = 0x8, scoped, tag = 'scoped memory for tpu_custom_call.1']
    #allocation8 [shape = 'u8[163840]{0}', space=vmem, size = 0x28000, scoped, tag = 'output window, operand 0']
    %8 = vsyncpa [#allocation4], 0
    %9 = vsyncpa [#allocation7], 0
    %s10 = scalar_lea.sflag [#allocation7], 1
    %11 = vsyncpa %s10, 0
    %12 = vsyncpa [#allocation5], 0
    %s13 = scalar_lea.sflag [#allocation5], 1
    %14 = vsyncpa %s13, 0
    loop: start=0, step=1, limit=4
    $region2: #{tpu_custom_call.1} parent=1 // loop_pre_header
      _
    $region3: #{tpu_custom_call.1} parent=1 // loop_header
      %s16 = sphi 0, %s20
      %p17 = scmp.ge.s32.totalorder %s16, 4
      %s23 = sphi 0, %s42
      %s24 = sphi 0, %s38
      %s25 = sphi 0, %s34
      %s26 = sphi 0, %s23
      %s27 = sphi 0, %s24
      %s28 = sphi 0, %s25
      %s29 = sphi 0, %s26
      %s30 = sphi 0, %s27
      %s31 = sphi 0, %s28
      %s47 = sphi 0, %s49
      %s50 = sphi 0, %s47
      %s51 = sphi 0, %s50
      %s67 = sphi 0, %s51
      %s75 = sphi 0, %s77
      %s78 = sphi 0, %s75
      %s79 = sphi 0, %s78
      %s95 = sphi 0, %s79
      %s101 = sphi 0, %s103
      %s104 = sphi 0, %s101
      %s105 = sphi 0, %s104
      %s121 = sphi 0, %s105
      %s129 = sphi 0, %s131
      %s132 = sphi 0, %s129
      %s133 = sphi 0, %s132
      %s149 = sphi 0, %s133
    $region4: #{tpu_custom_call.1} parent=1 // loop_header_branch
      %19 = sbr.rel (%p17) target = $region8
    $region5: #{tpu_custom_call.1} parent=1 // loop_body
      %s21 = ssub.s32 %s16, 1
      %s22 = ssub.s32 %s16, 2
      %s32 = sadd.s32 1, %s25
      %p33 = scmp.ge.s32.totalorder %s32, 1
      %s34 = scalar_select %p33, 0, %s32
      %s35 = sadd.s32 1, %s24
      %s36 = scalar_select %p33, %s35, %s24
      %p37 = scmp.ge.s32.totalorder %s36, 1
      %s38 = scalar_select %p37, 0, %s36
      %s39 = sadd.s32 1, %s23
      %s40 = scalar_select %p37, %s39, %s23
      %p41 = scmp.ge.s32.totalorder %s40, 2
      %s42 = scalar_select %p41, 0, %s40
      %s43 = ssub.s32 %s24, %s38
      %s44 = ssub.s32 %s25, %s34
      %s45 = sor.u32 %s43, %s44
      %p46 = scmp.eq.s32.totalorder %s45, 0
      %s48 = sadd.s32 %s47, 1
      %s49 = scalar_select %p46, %s47, %s48
      %p52 = pneg %p46
      %p53 = scmp.eq.s32.totalorder %s16, 1
      %p54 = por %p52, %p53
      %p55 = scmp.ne.s32.totalorder %s47, %s50
      %p56 = scmp.eq.s32.totalorder %s16, 0
      %p57 = por %p55, %p56
      %p58 = scmp.ne.s32.totalorder %s47, %s50
      %p59 = scmp.eq.s32.totalorder %s21, 1
      %p60 = por %p58, %p59
      %p61 = scmp.ne.s32.totalorder %s50, %s51
      %p62 = scmp.eq.s32.totalorder %s21, 0
      %p63 = por %p61, %p62
      %p64 = scmp.ne.s32.totalorder %s50, %s51
      %p65 = scmp.eq.s32.totalorder %s22, 1
      %p66 = por %p64, %p65
      %p68 = scmp.ne.s32.totalorder %s51, %s67
      %p69 = scmp.eq.s32.totalorder %s22, 0
      %p70 = por %p68, %p69
      %s71 = ssub.s32 %s25, %s34
      %s72 = ssub.s32 %s23, %s42
      %s73 = sor.u32 %s71, %s72
      %p74 = scmp.eq.s32.totalorder %s73, 0
      %s76 = sadd.s32 %s75, 1
      %s77 = scalar_select %p74, %s75, %s76
      %p80 = pneg %p74
      %p81 = scmp.eq.s32.totalorder %s16, 1
      %p82 = por %p80, %p81
      %p83 = scmp.ne.s32.totalorder %s75, %s78
      %p84 = scmp.eq.s32.totalorder %s16, 0
      %p85 = por %p83, %p84
      %p86 = scmp.ne.s32.totalorder %s75, %s78
      %p87 = scmp.eq.s32.totalorder %s21, 1
      %p88 = por %p86, %p87
      %p89 = scmp.ne.s32.totalorder %s78, %s79
      %p90 = scmp.eq.s32.totalorder %s21, 0
      %p91 = por %p89, %p90
      %p92 = scmp.ne.s32.totalorder %s78, %s79
      %p93 = scmp.eq.s32.totalorder %s22, 1
      %p94 = por %p92, %p93
      %p96 = scmp.ne.s32.totalorder %s79, %s95
      %p97 = scmp.eq.s32.totalorder %s22, 0
      %p98 = por %p96, %p97
      %s99 = ssub.s32 %s23, %s42
      %p100 = scmp.eq.s32.totalorder %s99, 0
      %s102 = sadd.s32 %s101, 1
      %s103 = scalar_select %p100, %s101, %s102
      %p106 = pneg %p100
      %p107 = scmp.eq.s32.totalorder %s16, 1
      %p108 = por %p106, %p107
      %p109 = scmp.ne.s32.totalorder %s101, %s104
      %p110 = scmp.eq.s32.totalorder %s16, 0
      %p111 = por %p109, %p110
      %p112 = scmp.ne.s32.totalorder %s101, %s104
      %p113 = scmp.eq.s32.totalorder %s21, 1
      %p114 = por %p112, %p113
      %p115 = scmp.ne.s32.totalorder %s104, %s105
      %p116 = scmp.eq.s32.totalorder %s21, 0
      %p117 = por %p115, %p116
      %p118 = scmp.ne.s32.totalorder %s104, %s105
      %p119 = scmp.eq.s32.totalorder %s22, 1
      %p120 = por %p118, %p119
      %p122 = scmp.ne.s32.totalorder %s105, %s121
      %p123 = scmp.eq.s32.totalorder %s22, 0
      %p124 = por %p122, %p123
      %s125 = ssub.s32 %s24, %s38
      %s126 = ssub.s32 %s23, %s42
      %s127 = sor.u32 %s125, %s126
      %p128 = scmp.eq.s32.totalorder %s127, 0
      %s130 = sadd.s32 %s129, 1
      %s131 = scalar_select %p128, %s129, %s130
      %p134 = pneg %p128
      %p135 = scmp.eq.s32.totalorder %s16, 1
      %p136 = por %p134, %p135
      %p137 = scmp.ne.s32.totalorder %s129, %s132
      %p138 = scmp.eq.s32.totalorder %s16, 0
      %p139 = por %p137, %p138
      %p140 = scmp.ne.s32.totalorder %s129, %s132
      %p141 = scmp.eq.s32.totalorder %s21, 1
      %p142 = por %p140, %p141
      %p143 = scmp.ne.s32.totalorder %s132, %s133
      %p144 = scmp.eq.s32.totalorder %s21, 0
      %p145 = por %p143, %p144
      %p146 = scmp.ne.s32.totalorder %s132, %s133
      %p147 = scmp.eq.s32.totalorder %s22, 1
      %p148 = por %p146, %p147
      %p150 = scmp.ne.s32.totalorder %s133, %s149
      %p151 = scmp.eq.s32.totalorder %s22, 0
      %p152 = por %p150, %p151
      %p153 = scmp.le.s32.totalorder 1, %s16
      %p154 = scmp.lt.s32.totalorder %s16, 3
      %p155 = pnand %p153, %p154
      %p156 = pneg %p155
      // Predicated region
      $region9: #{tpu_custom_call.1} parent=5 // pred_check
        _
      $region10: #{tpu_custom_call.1} parent=5 // pred_check_branch
        %158 = sbr.rel (%p155) target = $region12
      $region11: #{tpu_custom_call.1} parent=5 // pred_region
        %s159 = ssub.s32 %s16, 1
        // Predicated region
        $region13: #{tpu_custom_call.1} parent=11 // pred_check
          %p160 = pneg %p63
        $region14: #{tpu_custom_call.1} parent=11 // pred_check_branch
          %162 = sbr.rel (%p160) target = $region16
        $region15: #{tpu_custom_call.1} parent=11 // pred_region
          %s163 = smul.u32 20, %s27
          %s164 = smul.u32 3, %s28
          %s166 = ssub.s32 3840, 3840
          %167 = vsyncadd [#allocation4], %s166
          %s168 = smul.addr %s163, 3
          %s169 = sadd.s32 %s164, %s168
          %s170 = smul.addr %s169, 64
          %s171 = scalar_lea.hbm %s0, %s170
          %s172 = sshll.u32 [#allocation3], 4
          %s173 = int_to_ptr.vmem [resolvable:$true] %s172
          %178 = dma.hbm_to_vmem [thread:$0]  %s171, 3840, %s173, [#allocation4], 192, 192, 12
        $region16: #{tpu_custom_call.1} parent=11 // pred_fallthru
          _
      $region12: #{tpu_custom_call.1} parent=5 // pred_fallthru
        _
      %p179 = scmp.lt.s32.totalorder %s16, 2
      // Predicated region
      $region17: #{tpu_custom_call.1} parent=5 // pred_check
        %p180 = pneg %p179
      $region18: #{tpu_custom_call.1} parent=5 // pred_check_branch
        %182 = sbr.rel (%p180) target = $region20
      $region19: #{tpu_custom_call.1} parent=5 // pred_region
        // Predicated region
        $region21: #{tpu_custom_call.1} parent=19 // pred_check
          %p183 = pneg %p85
        $region22: #{tpu_custom_call.1} parent=19 // pred_check_branch
          %185 = sbr.rel (%p183) target = $region24
        $region23: #{tpu_custom_call.1} parent=19 // pred_region
          %s186 = sand.u32 %s75, 1
          %s187 = scalar_lea.sflag [#allocation7], %s186
          %s188 = sand.u32 %s75, 1
          %s189 = smul.addr %s188, 192
          %s190 = scalar_lea.vmem [#allocation6], %s189
          %s191 = smul.u32 48, %s25
          %s193 = ssub.s32 3072, 3072
          %194 = vsyncadd %s187, %s193
          %s195 = smul.addr %s191, 2
          %s196 = sadd.s32 %s23, %s195
          %s197 = smul.addr %s196, 64
          %s198 = scalar_lea.hbm %s1, %s197
          %s199 = sshll.u32 %s190, 4
          %s200 = int_to_ptr.vmem [resolvable:$true] %s199
          %205 = dma.hbm_to_vmem [thread:$0]  %s198, 3072, %s200, %s187, 128, 64, 4
        $region24: #{tpu_custom_call.1} parent=19 // pred_fallthru
          _
        // Predicated region
        $region25: #{tpu_custom_call.1} parent=19 // pred_check
          %p206 = pneg %p111
        $region26: #{tpu_custom_call.1} parent=19 // pred_check_branch
          %208 = sbr.rel (%p206) target = $region28
        $region27: #{tpu_custom_call.1} parent=19 // pred_region
          %p209 = scmp.lt.s32.totalorder %s23, 1
          %s210 = scalar_select %p209, %s23, 1
          %s211 = scalar_lea.vmem %s2, %s210
        $region28: #{tpu_custom_call.1} parent=19 // pred_fallthru
          _
      $region20: #{tpu_custom_call.1} parent=5 // pred_fallthru
        _
      %p212 = scmp.le.s32.totalorder 1, %s16
      %p213 = scmp.lt.s32.totalorder %s16, 3
      %p214 = pnand %p212, %p213
      %p215 = pneg %p214
      // Predicated region
      $region29: #{tpu_custom_call.1} parent=5 // pred_check
        _
      $region30: #{tpu_custom_call.1} parent=5 // pred_check_branch
        %217 = sbr.rel (%p214) target = $region32
      $region31: #{tpu_custom_call.1} parent=5 // pred_region
        %s218 = ssub.s32 %s16, 1
        // Predicated region
        $region33: #{tpu_custom_call.1} parent=31 // pred_check
          %p219 = pneg %p63
        $region34: #{tpu_custom_call.1} parent=31 // pred_check_branch
          %221 = sbr.rel (%p219) target = $region36
        $region35: #{tpu_custom_call.1} parent=31 // pred_region
          %222 = dma.done [#allocation4], 3840
        $region36: #{tpu_custom_call.1} parent=31 // pred_fallthru
          _
        %s223 = sand.u32 %s78, 1
        %s224 = scalar_lea.sflag [#allocation7], %s223
        %s225 = sand.u32 %s78, 1
        %s226 = smul.addr %s225, 192
        %s227 = scalar_lea.vmem [#allocation6], %s226
        // Predicated region
        $region37: #{tpu_custom_call.1} parent=31 // pred_check
          %p228 = pneg %p91
        $region38: #{tpu_custom_call.1} parent=31 // pred_check_branch
          %230 = sbr.rel (%p228) target = $region40
        $region39: #{tpu_custom_call.1} parent=31 // pred_region
          %231 = dma.done %s224, 3072
        $region40: #{tpu_custom_call.1} parent=31 // pred_fallthru
          _
        %p232 = pneg %p63
        %p233 = pneg %p60
        %s234 = sand.u32 %s78, 1
        %s235 = scalar_lea.sflag [#allocation7], %s234
        %s236 = sand.u32 %s78, 1
        %s237 = smul.addr %s236, 192
        %s238 = scalar_lea.vmem [#allocation6], %s237
        %p239 = pneg %p91
        %p240 = pneg %p88
        %p241 = scmp.lt.s32.totalorder %s26, 1
        %s242 = scalar_select %p241, %s26, 1
        %s243 = scalar_lea.vmem %s2, %s242
        %p244 = pneg %p117
        %p245 = pneg %p114
        %p246 = pneg %p145
        %p247 = pneg %p142
        %s248 = sand.u32 %s132, 1
        %s249 = scalar_lea.sflag [#allocation5], %s248
        %s250 = sand.u32 %s132, 1
        %s251 = smul.addr %s250, 160
        %s252 = scalar_lea.vmem [#allocation8], %s251
        %s253 = smul.u32 20, %s27
        %s254 = smul.u32 3, %s28
        %s255 = smul.u32 48, %s28
        %p256 = scmp.lt.s32.totalorder %s26, 1
        %s257 = scalar_select %p256, %s26, 1
        %s258 = scalar_lea.vmem %s2, %s257
        %s259 = smul.u32 20, %s27
        %p261 = scmp.eq.s32.totalorder %s28, 0
        // Predicated region
        $region41: #{tpu_custom_call.1} parent=31 // pred_check
          %p262 = pneg %p261
        $region42: #{tpu_custom_call.1} parent=31 // pred_check_branch
          %264 = sbr.rel (%p262) target = $region44
        $region43: #{tpu_custom_call.1} parent=31 // pred_region
          %v265 = vld [vmem:[%s258] sm:$0x1]
          %v267 = vlaneseq
          %v268 = vshrl.u32 %v267, 7
          %v269 = vsub.s32 0, %v268
          %v270 = vrot.slane %v265, %v269
          %272 = vst [vmem:[#allocation2] sm:$0xff] %v270
          %273 = vst [vmem:[#allocation2 + $0x8] sm:$0xff] %v270
          %274 = vst [vmem:[#allocation2 + $0x10] sm:$0xff] %v270
          %275 = vst [vmem:[#allocation2 + $0x18] sm:$0xff] %v270
          %276 = vst [vmem:[#allocation2 + $0x20] sm:$0xff] %v270
          %277 = vst [vmem:[#allocation2 + $0x28] sm:$0xff] %v270
          %278 = vst [vmem:[#allocation2 + $0x30] sm:$0xff] %v270
          %279 = vst [vmem:[#allocation2 + $0x38] sm:$0xff] %v270
          %280 = vst [vmem:[#allocation2 + $0x40] sm:$0xff] %v270
          %281 = vst [vmem:[#allocation2 + $0x48] sm:$0xff] %v270
          %282 = vst [vmem:[#allocation2 + $0x50] sm:$0xff] %v270
          %283 = vst [vmem:[#allocation2 + $0x58] sm:$0xff] %v270
          %284 = vst [vmem:[#allocation2 + $0x60] sm:$0xff] %v270
          %285 = vst [vmem:[#allocation2 + $0x68] sm:$0xff] %v270
          %286 = vst [vmem:[#allocation2 + $0x70] sm:$0xff] %v270
          %287 = vst [vmem:[#allocation2 + $0x78] sm:$0xff] %v270
          %288 = vst [vmem:[#allocation2 + $0x80] sm:$0xff] %v270
          %289 = vst [vmem:[#allocation2 + $0x88] sm:$0xff] %v270
          %290 = vst [vmem:[#allocation2 + $0x90] sm:$0xff] %v270
          %291 = vst [vmem:[#allocation2 + $0x98] sm:$0xff] %v270
        $region44: #{tpu_custom_call.1} parent=31 // pred_fallthru
          _
        %v292 = vld [vmem:[#allocation2] sm:$0xff]
        %v293 = vld [vmem:[#allocation2 + $0x8] sm:$0xff]
        %v294 = vld [vmem:[#allocation2 + $0x10] sm:$0xff]
        %v295 = vld [vmem:[#allocation2 + $0x18] sm:$0xff]
        %v296 = vld [vmem:[#allocation2 + $0x20] sm:$0xff]
        %v297 = vld [vmem:[#allocation2 + $0x28] sm:$0xff]
        %v298 = vld [vmem:[#allocation2 + $0x30] sm:$0xff]
        %v299 = vld [vmem:[#allocation2 + $0x38] sm:$0xff]
        %v300 = vld [vmem:[#allocation2 + $0x40] sm:$0xff]
        %v301 = vld [vmem:[#allocation2 + $0x48] sm:$0xff]
        %v302 = vld [vmem:[#allocation2 + $0x50] sm:$0xff]
        %v303 = vld [vmem:[#allocation2 + $0x58] sm:$0xff]
        %v304 = vld [vmem:[#allocation2 + $0x60] sm:$0xff]
        %v305 = vld [vmem:[#allocation2 + $0x68] sm:$0xff]
        %v306 = vld [vmem:[#allocation2 + $0x70] sm:$0xff]
        %v307 = vld [vmem:[#allocation2 + $0x78] sm:$0xff]
        %v308 = vld [vmem:[#allocation2 + $0x80] sm:$0xff]
        %v309 = vld [vmem:[#allocation2 + $0x88] sm:$0xff]
        %v310 = vld [vmem:[#allocation2 + $0x90] sm:$0xff]
        %v311 = vld [vmem:[#allocation2 + $0x98] sm:$0xff]
        %v312 = vld [vmem:[#allocation3] sm:$0xff]
        %v313 = vld [vmem:[#allocation3 + $0x8] sm:$0xf]
        %v314 = vld [vmem:[#allocation3 + $0xc] sm:$0xff]
        %v315 = vld [vmem:[#allocation3 + $0x14] sm:$0xf]
        %v316 = vld [vmem:[#allocation3 + $0x18] sm:$0xff]
        %v317 = vld [vmem:[#allocation3 + $0x20] sm:$0xf]
        %v318 = vld [vmem:[#allocation3 + $0x24] sm:$0xff]
        %v319 = vld [vmem:[#allocation3 + $0x2c] sm:$0xf]
        %v320 = vld [vmem:[#allocation3 + $0x30] sm:$0xff]
        %v321 = vld [vmem:[#allocation3 + $0x38] sm:$0xf]
        %v322 = vld [vmem:[#allocation3 + $0x3c] sm:$0xff]
        %v323 = vld [vmem:[#allocation3 + $0x44] sm:$0xf]
        %v324 = vld [vmem:[#allocation3 + $0x48] sm:$0xff]
        %v325 = vld [vmem:[#allocation3 + $0x50] sm:$0xf]
        %v326 = vld [vmem:[#allocation3 + $0x54] sm:$0xff]
        %v327 = vld [vmem:[#allocation3 + $0x5c] sm:$0xf]
        %v328 = vld [vmem:[#allocation3 + $0x60] sm:$0xff]
        %v329 = vld [vmem:[#allocation3 + $0x68] sm:$0xf]
        %v330 = vld [vmem:[#allocation3 + $0x6c] sm:$0xff]
        %v331 = vld [vmem:[#allocation3 + $0x74] sm:$0xf]
        %v332 = vld [vmem:[#allocation3 + $0x78] sm:$0xff]
        %v333 = vld [vmem:[#allocation3 + $0x80] sm:$0xf]
        %v334 = vld [vmem:[#allocation3 + $0x84] sm:$0xff]
        %v335 = vld [vmem:[#allocation3 + $0x8c] sm:$0xf]
        %v336 = vld [vmem:[#allocation3 + $0x90] sm:$0xff]
        %v337 = vld [vmem:[#allocation3 + $0x98] sm:$0xf]
        %v338 = vld [vmem:[#allocation3 + $0x9c] sm:$0xff]
        %v339 = vld [vmem:[#allocation3 + $0xa4] sm:$0xf]
        %v340 = vld [vmem:[#allocation3 + $0xa8] sm:$0xff]
        %v341 = vld [vmem:[#allocation3 + $0xb0] sm:$0xf]
        %v342 = vld [vmem:[#allocation3 + $0xb4] sm:$0xff]
        %v343 = vld [vmem:[#allocation3 + $0xbc] sm:$0xf]
        %v344 = vld [vmem:[#allocation3 + $0xc0] sm:$0xff]
        %v345 = vld [vmem:[#allocation3 + $0xc8] sm:$0xf]
        %v346 = vld [vmem:[#allocation3 + $0xcc] sm:$0xff]
        %v347 = vld [vmem:[#allocation3 + $0xd4] sm:$0xf]
        %v348 = vld [vmem:[#allocation3 + $0xd8] sm:$0xff]
        %v349 = vld [vmem:[#allocation3 + $0xe0] sm:$0xf]
        %v350 = vld [vmem:[#allocation3 + $0xe4] sm:$0xff]
        %v351 = vld [vmem:[#allocation3 + $0xec] sm:$0xf]
        %v352 = vld [vmem:[%s227] sm:$0xf]
        %v353 = vld [vmem:[%s227 + $0x4] sm:$0xf]
        %v354 = vld [vmem:[%s227 + $0x8] sm:$0xf]
        %v355 = vld [vmem:[%s227 + $0xc] sm:$0xf]
        %v356 = vld [vmem:[%s227 + $0x10] sm:$0xf]
        %v357 = vld [vmem:[%s227 + $0x14] sm:$0xf]
        %v358 = vld [vmem:[%s227 + $0x18] sm:$0xf]
        %v359 = vld [vmem:[%s227 + $0x1c] sm:$0xf]
        %v360 = vld [vmem:[%s227 + $0x20] sm:$0xf]
        %v361 = vld [vmem:[%s227 + $0x24] sm:$0xf]
        %v362 = vld [vmem:[%s227 + $0x28] sm:$0xf]
        %v363 = vld [vmem:[%s227 + $0x2c] sm:$0xf]
        %v364 = vld [vmem:[%s227 + $0x30] sm:$0xf]
        %v365 = vld [vmem:[%s227 + $0x34] sm:$0xf]
        %v366 = vld [vmem:[%s227 + $0x38] sm:$0xf]
        %v367 = vld [vmem:[%s227 + $0x3c] sm:$0xf]
        %v368 = vld [vmem:[%s227 + $0x40] sm:$0xf]
        %v369 = vld [vmem:[%s227 + $0x44] sm:$0xf]
        %v370 = vld [vmem:[%s227 + $0x48] sm:$0xf]
        %v371 = vld [vmem:[%s227 + $0x4c] sm:$0xf]
        %v372 = vld [vmem:[%s227 + $0x50] sm:$0xf]
        %v373 = vld [vmem:[%s227 + $0x54] sm:$0xf]
        %v374 = vld [vmem:[%s227 + $0x58] sm:$0xf]
        %v375 = vld [vmem:[%s227 + $0x5c] sm:$0xf]
        %v376 = vld [vmem:[%s227 + $0x60] sm:$0xf]
        %v377 = vld [vmem:[%s227 + $0x64] sm:$0xf]
        %v378 = vld [vmem:[%s227 + $0x68] sm:$0xf]
        %v379 = vld [vmem:[%s227 + $0x6c] sm:$0xf]
        %v380 = vld [vmem:[%s227 + $0x70] sm:$0xf]
        %v381 = vld [vmem:[%s227 + $0x74] sm:$0xf]
        %v382 = vld [vmem:[%s227 + $0x78] sm:$0xf]
        %v383 = vld [vmem:[%s227 + $0x7c] sm:$0xf]
        %v384 = vld [vmem:[%s227 + $0x80] sm:$0xf]
        %v385 = vld [vmem:[%s227 + $0x84] sm:$0xf]
        %v386 = vld [vmem:[%s227 + $0x88] sm:$0xf]
        %v387 = vld [vmem:[%s227 + $0x8c] sm:$0xf]
        %v388 = vld [vmem:[%s227 + $0x90] sm:$0xf]
        %v389 = vld [vmem:[%s227 + $0x94] sm:$0xf]
        %v390 = vld [vmem:[%s227 + $0x98] sm:$0xf]
        %v391 = vld [vmem:[%s227 + $0x9c] sm:$0xf]
        %v392 = vld [vmem:[%s227 + $0xa0] sm:$0xf]
        %v393 = vld [vmem:[%s227 + $0xa4] sm:$0xf]
        %v394 = vld [vmem:[%s227 + $0xa8] sm:$0xf]
        %v395 = vld [vmem:[%s227 + $0xac] sm:$0xf]
        %v396 = vld [vmem:[%s227 + $0xb0] sm:$0xf]
        %v397 = vld [vmem:[%s227 + $0xb4] sm:$0xf]
        %v398 = vld [vmem:[%s227 + $0xb8] sm:$0xf]
        %v399 = vld [vmem:[%s227 + $0xbc] sm:$0xf]
        %v440 = vunpack.c.l.b16 %v312
        %v441 = vunpack.c.h.b16 %v312
        %v442 = vunpack.c.l.b16 %v313
        %v443 = vunpack.c.l.b16 %v314
        %v444 = vunpack.c.h.b16 %v314
        %v445 = vunpack.c.l.b16 %v315
        %v446 = vunpack.c.l.b16 %v316
        %v447 = vunpack.c.h.b16 %v316
        %v448 = vunpack.c.l.b16 %v317
        %v449 = vunpack.c.l.b16 %v318
        %v450 = vunpack.c.h.b16 %v318
        %v451 = vunpack.c.l.b16 %v319
        %v452 = vunpack.c.l.b16 %v320
        %v453 = vunpack.c.h.b16 %v320
        %v454 = vunpack.c.l.b16 %v321
        %v455 = vunpack.c.l.b16 %v322
        %v456 = vunpack.c.h.b16 %v322
        %v457 = vunpack.c.l.b16 %v323
        %v458 = vunpack.c.l.b16 %v324
        %v459 = vunpack.c.h.b16 %v324
        %v460 = vunpack.c.l.b16 %v325
        %v461 = vunpack.c.l.b16 %v326
        %v462 = vunpack.c.h.b16 %v326
        %v463 = vunpack.c.l.b16 %v327
        %v464 = vunpack.c.l.b16 %v328
        %v465 = vunpack.c.h.b16 %v328
        %v466 = vunpack.c.l.b16 %v329
        %v467 = vunpack.c.l.b16 %v330
        %v468 = vunpack.c.h.b16 %v330
        %v469 = vunpack.c.l.b16 %v331
        %v470 = vunpack.c.l.b16 %v332
        %v471 = vunpack.c.h.b16 %v332
        %v472 = vunpack.c.l.b16 %v333
        %v473 = vunpack.c.l.b16 %v334
        %v474 = vunpack.c.h.b16 %v334
        %v475 = vunpack.c.l.b16 %v335
        %v476 = vunpack.c.l.b16 %v336
        %v477 = vunpack.c.h.b16 %v336
        %v478 = vunpack.c.l.b16 %v337
        %v479 = vunpack.c.l.b16 %v338
        %v480 = vunpack.c.h.b16 %v338
        %v481 = vunpack.c.l.b16 %v339
        %v482 = vunpack.c.l.b16 %v340
        %v483 = vunpack.c.h.b16 %v340
        %v484 = vunpack.c.l.b16 %v341
        %v485 = vunpack.c.l.b16 %v342
        %v486 = vunpack.c.h.b16 %v342
        %v487 = vunpack.c.l.b16 %v343
        %v488 = vunpack.c.l.b16 %v344
        %v489 = vunpack.c.h.b16 %v344
        %v490 = vunpack.c.l.b16 %v345
        %v491 = vunpack.c.l.b16 %v346
        %v492 = vunpack.c.h.b16 %v346
        %v493 = vunpack.c.l.b16 %v347
        %v494 = vunpack.c.l.b16 %v348
        %v495 = vunpack.c.h.b16 %v348
        %v496 = vunpack.c.l.b16 %v349
        %v497 = vunpack.c.l.b16 %v350
        %v498 = vunpack.c.h.b16 %v350
        %v499 = vunpack.c.l.b16 %v351
        %v500 = vpack.c.b16 %v443, %v440
        %v501 = vpack.c.b16 %v444, %v441
        %v502 = vpack.c.b16 %v445, %v442
        %v503 = vpack.c.b16 %v449, %v446
        %v504 = vpack.c.b16 %v450, %v447
        %v505 = vpack.c.b16 %v451, %v448
        %v506 = vpack.c.b16 %v455, %v452
        %v507 = vpack.c.b16 %v456, %v453
        %v508 = vpack.c.b16 %v457, %v454
        %v509 = vpack.c.b16 %v461, %v458
        %v510 = vpack.c.b16 %v462, %v459
        %v511 = vpack.c.b16 %v463, %v460
        %v512 = vpack.c.b16 %v467, %v464
        %v513 = vpack.c.b16 %v468, %v465
        %v514 = vpack.c.b16 %v469, %v466
        %v515 = vpack.c.b16 %v473, %v470
        %v516 = vpack.c.b16 %v474, %v471
        %v517 = vpack.c.b16 %v475, %v472
        %v518 = vpack.c.b16 %v479, %v476
        %v519 = vpack.c.b16 %v480, %v477
        %v520 = vpack.c.b16 %v481, %v478
        %v521 = vpack.c.b16 %v485, %v482
        %v522 = vpack.c.b16 %v486, %v483
        %v523 = vpack.c.b16 %v487, %v484
        %v524 = vpack.c.b16 %v491, %v488
        %v525 = vpack.c.b16 %v492, %v489
        %v526 = vpack.c.b16 %v493, %v490
        %v527 = vpack.c.b16 %v497, %v494
        %v528 = vpack.c.b16 %v498, %v495
        %v529 = vpack.c.b16 %v499, %v496
        %v608 = vunpack.c.l.b16 %v352
        %v609 = vunpack.c.l.b16 %v353
        %v610 = vunpack.c.l.b16 %v354
        %v611 = vunpack.c.l.b16 %v355
        %v612 = vunpack.c.l.b16 %v356
        %v613 = vunpack.c.l.b16 %v357
        %v614 = vunpack.c.l.b16 %v358
        %v615 = vunpack.c.l.b16 %v359
        %v616 = vunpack.c.l.b16 %v360
        %v617 = vunpack.c.l.b16 %v361
        %v618 = vunpack.c.l.b16 %v362
        %v619 = vunpack.c.l.b16 %v363
        %v620 = vunpack.c.l.b16 %v364
        %v621 = vunpack.c.l.b16 %v365
        %v622 = vunpack.c.l.b16 %v366
        %v623 = vunpack.c.l.b16 %v367
        %v624 = vunpack.c.l.b16 %v368
        %v625 = vunpack.c.l.b16 %v369
        %v626 = vunpack.c.l.b16 %v370
        %v627 = vunpack.c.l.b16 %v371
        %v628 = vunpack.c.l.b16 %v372
        %v629 = vunpack.c.l.b16 %v373
        %v630 = vunpack.c.l.b16 %v374
        %v631 = vunpack.c.l.b16 %v375
        %v632 = vunpack.c.l.b16 %v376
        %v633 = vunpack.c.l.b16 %v377
        %v634 = vunpack.c.l.b16 %v378
        %v635 = vunpack.c.l.b16 %v379
        %v636 = vunpack.c.l.b16 %v380
        %v637 = vunpack.c.l.b16 %v381
        %v638 = vunpack.c.l.b16 %v382
        %v639 = vunpack.c.l.b16 %v383
        %v640 = vunpack.c.l.b16 %v384
        %v641 = vunpack.c.l.b16 %v385
        %v642 = vunpack.c.l.b16 %v386
        %v643 = vunpack.c.l.b16 %v387
        %v644 = vunpack.c.l.b16 %v388
        %v645 = vunpack.c.l.b16 %v389
        %v646 = vunpack.c.l.b16 %v390
        %v647 = vunpack.c.l.b16 %v391
        %v648 = vunpack.c.l.b16 %v392
        %v649 = vunpack.c.l.b16 %v393
        %v650 = vunpack.c.l.b16 %v394
        %v651 = vunpack.c.l.b16 %v395
        %v652 = vunpack.c.l.b16 %v396
        %v653 = vunpack.c.l.b16 %v397
        %v654 = vunpack.c.l.b16 %v398
        %v655 = vunpack.c.l.b16 %v399
        %v656 = vpack.c.b16 %v609, %v608
        %v657 = vpack.c.b16 %v611, %v610
        %v658 = vpack.c.b16 %v613, %v612
        %v659 = vpack.c.b16 %v615, %v614
        %v660 = vpack.c.b16 %v617, %v616
        %v661 = vpack.c.b16 %v619, %v618
        %v662 = vpack.c.b16 %v621, %v620
        %v663 = vpack.c.b16 %v623, %v622
        %v664 = vpack.c.b16 %v625, %v624
        %v665 = vpack.c.b16 %v627, %v626
        %v666 = vpack.c.b16 %v629, %v628
        %v667 = vpack.c.b16 %v631, %v630
        %v668 = vpack.c.b16 %v633, %v632
        %v669 = vpack.c.b16 %v635, %v634
        %v670 = vpack.c.b16 %v637, %v636
        %v671 = vpack.c.b16 %v639, %v638
        %v672 = vpack.c.b16 %v641, %v640
        %v673 = vpack.c.b16 %v643, %v642
        %v674 = vpack.c.b16 %v645, %v644
        %v675 = vpack.c.b16 %v647, %v646
        %v676 = vpack.c.b16 %v649, %v648
        %v677 = vpack.c.b16 %v651, %v650
        %v678 = vpack.c.b16 %v653, %v652
        %v679 = vpack.c.b16 %v655, %v654
        %704 = vmatprep.subr.bf16.mxu0 0
        %705 = vmatpush1.bf16.msra.mxu0 %v656
        %706 = vmatprep.subr.bf16.mxu0 0
        %707 = vmatpush1.bf16.msra.mxu0 %v657
        %708 = vmatprep.subr.bf16.mxu0 0
        %709 = vmatpush1.bf16.msra.mxu0 %v658
        %710 = vmatprep.subr.bf16.mxu0 0
        %711 = vmatpush1.bf16.msra.mxu0 %v659
        %712 = vmatprep.subr.bf16.mxu0 0
        %713 = vmatpush1.bf16.msra.mxu0 %v660
        %714 = vmatprep.subr.bf16.mxu0 0
        %715 = vmatpush1.bf16.msra.mxu0 %v661
        %716 = vmatprep.subr.bf16.mxu0 0
        %717 = vmatpush1.bf16.msra.mxu0 %v662
        %718 = vmatprep.subr.bf16.mxu0 0
        %719 = vmatpush1.bf16.msra.mxu0 %v663
        %720 = vmatprep.subr.bf16.mxu0 0
        %721 = vmatpush1.bf16.msra.mxu0 %v664
        %722 = vmatprep.subr.bf16.mxu0 0
        %723 = vmatpush1.bf16.msra.mxu0 %v665
        %724 = vmatprep.subr.bf16.mxu0 0
        %725 = vmatpush1.bf16.msra.mxu0 %v666
        %726 = vmatprep.subr.bf16.mxu0 0
        %727 = vmatpush1.bf16.msra.mxu0 %v667
        %728 = vmatprep.subr.bf16.mxu0 0
        %729 = vmatpush1.bf16.msra.mxu0 %v668
        %730 = vmatprep.subr.bf16.mxu0 0
        %731 = vmatpush1.bf16.msra.mxu0 %v669
        %732 = vmatprep.subr.bf16.mxu0 0
        %733 = vmatpush1.bf16.msra.mxu0 %v670
        %734 = vmatprep.subr.bf16.mxu0 0
        %735 = vmatpush1.bf16.msra.mxu0 %v671
        %736 = vmatprep.mubr.bf16.mxu0 %v501
        %737 = vmatmul.mubr.bf16.gmra.mrb[0].mxu0 %v500
        %v738 = vpop.f32.mrb[0].mxu0
        %v739 = vadd.f32 0.0, %v738
        %v740 = vpop.f32.mrb[0].mxu0
        %v741 = vpop.f32.mrb[0].mxu0
        %v742 = vadd.f32 0.0, %v741
        %v743 = vpop.f32.mrb[0].mxu0
        %744 = vmatprep.mubr.bf16.mxu0 %v504
        %745 = vmatmul.mubr.bf16.gmra.mrb[0].mxu0 %v503
        %v746 = vpop.f32.mrb[0].mxu0
        %v747 = vadd.f32 0.0, %v746
        %v748 = vpop.f32.mrb[0].mxu0
        %v749 = vpop.f32.mrb[0].mxu0
        %v750 = vadd.f32 0.0, %v749
        %v751 = vpop.f32.mrb[0].mxu0
        %752 = vmatprep.mubr.bf16.mxu0 %v507
        %753 = vmatmul.mubr.bf16.gmra.mrb[0].mxu0 %v506
        %v754 = vpop.f32.mrb[0].mxu0
        %v755 = vadd.f32 0.0, %v754
        %v756 = vpop.f32.mrb[0].mxu0
        %v757 = vpop.f32.mrb[0].mxu0
        %v758 = vadd.f32 0.0, %v757
        %v759 = vpop.f32.mrb[0].mxu0
        %760 = vmatprep.mubr.bf16.mxu0 %v510
        %761 = vmatmul.mubr.bf16.gmra.mrb[0].mxu0 %v509
        %v762 = vpop.f32.mrb[0].mxu0
        %v763 = vadd.f32 0.0, %v762
        %v764 = vpop.f32.mrb[0].mxu0
        %v765 = vpop.f32.mrb[0].mxu0
        %v766 = vadd.f32 0.0, %v765
        %v767 = vpop.f32.mrb[0].mxu0
        %768 = vmatprep.mubr.bf16.mxu0 %v513
        %769 = vmatmul.mubr.bf16.gmra.mrb[0].mxu0 %v512
        %v770 = vpop.f32.mrb[0].mxu0
        %v771 = vadd.f32 0.0, %v770
        %v772 = vpop.f32.mrb[0].mxu0
        %v773 = vpop.f32.mrb[0].mxu0
        %v774 = vadd.f32 0.0, %v773
        %v775 = vpop.f32.mrb[0].mxu0
        %776 = vmatprep.mubr.bf16.mxu0 %v516
        %777 = vmatmul.mubr.bf16.gmra.mrb[0].mxu0 %v515
        %v778 = vpop.f32.mrb[0].mxu0
        %v779 = vadd.f32 0.0, %v778
        %v780 = vpop.f32.mrb[0].mxu0
        %v781 = vpop.f32.mrb[0].mxu0
        %v782 = vadd.f32 0.0, %v781
        %v783 = vpop.f32.mrb[0].mxu0
        %784 = vmatprep.mubr.bf16.mxu0 %v519
        %785 = vmatmul.mubr.bf16.gmra.mrb[0].mxu0 %v518
        %v786 = vpop.f32.mrb[0].mxu0
        %v787 = vadd.f32 0.0, %v786
        %v788 = vpop.f32.mrb[0].mxu0
        %v789 = vpop.f32.mrb[0].mxu0
        %v790 = vadd.f32 0.0, %v789
        %v791 = vpop.f32.mrb[0].mxu0
        %792 = vmatprep.mubr.bf16.mxu0 %v522
        %793 = vmatmul.mubr.bf16.gmra.mrb[0].mxu0 %v521
        %v794 = vpop.f32.mrb[0].mxu0
        %v795 = vadd.f32 0.0, %v794
        %v796 = vpop.f32.mrb[0].mxu0
        %v797 = vpop.f32.mrb[0].mxu0
        %v798 = vadd.f32 0.0, %v797
        %v799 = vpop.f32.mrb[0].mxu0
        %800 = vmatprep.mubr.bf16.mxu0 %v525
        %801 = vmatmul.mubr.bf16.gmra.mrb[0].mxu0 %v524
        %v802 = vpop.f32.mrb[0].mxu0
        %v803 = vadd.f32 0.0, %v802
        %v804 = vpop.f32.mrb[0].mxu0
        %v805 = vpop.f32.mrb[0].mxu0
        %v806 = vadd.f32 0.0, %v805
        %v807 = vpop.f32.mrb[0].mxu0
        %808 = vmatprep.mubr.bf16.mxu0 %v528
        %809 = vmatmul.mubr.bf16.gmra.mrb[0].mxu0 %v527
        %v810 = vpop.f32.mrb[0].mxu0
        %v811 = vadd.f32 0.0, %v810
        %v812 = vpop.f32.mrb[0].mxu0
        %v813 = vpop.f32.mrb[0].mxu0
        %v814 = vadd.f32 0.0, %v813
        %v815 = vpop.f32.mrb[0].mxu0
        %816 = vdwg.mxu0
        %817 = vmatprep.subr.bf16.mxu0 0
        %818 = vmatpush1.bf16.msra.mxu0 %v672
        %819 = vmatprep.subr.bf16.mxu0 0
        %820 = vmatpush1.bf16.msra.mxu0 %v673
        %821 = vmatprep.subr.bf16.mxu0 0
        %822 = vmatpush1.bf16.msra.mxu0 %v674
        %823 = vmatprep.subr.bf16.mxu0 0
        %824 = vmatpush1.bf16.msra.mxu0 %v675
        %825 = vmatprep.subr.bf16.mxu0 0
        %826 = vmatpush1.bf16.msra.mxu0 %v676
        %827 = vmatprep.subr.bf16.mxu0 0
        %828 = vmatpush1.bf16.msra.mxu0 %v677
        %829 = vmatprep.subr.bf16.mxu0 0
        %830 = vmatpush1.bf16.msra.mxu0 %v678
        %831 = vmatprep.subr.bf16.mxu0 0
        %832 = vmatpush1.bf16.msra.mxu0 %v679
        %833 = vmatprep.subr.bf16.mxu0 0
        %834 = vmatpush1.bf16.msra.mxu0 0
        %835 = vmatprep.subr.bf16.mxu0 0
        %836 = vmatpush1.bf16.msra.mxu0 0
        %837 = vmatprep.subr.bf16.mxu0 0
        %838 = vmatpush1.bf16.msra.mxu0 0
        %839 = vmatprep.subr.bf16.mxu0 0
        %840 = vmatpush1.bf16.msra.mxu0 0
        %841 = vmatprep.subr.bf16.mxu0 0
        %842 = vmatpush1.bf16.msra.mxu0 0
        %843 = vmatprep.subr.bf16.mxu0 0
        %844 = vmatpush1.bf16.msra.mxu0 0
        %845 = vmatprep.subr.bf16.mxu0 0
        %846 = vmatpush1.bf16.msra.mxu0 0
        %847 = vmatprep.subr.bf16.mxu0 0
        %848 = vmatpush1.bf16.msra.mxu0 0
        %849 = vmatprep.mubr.bf16.mxu0 0
        %850 = vmatmul.mubr.bf16.gmra.mrb[0].mxu0 %v502
        %v851 = vpop.f32.mrb[0].mxu0
        %v852 = vadd.f32 %v739, %v851
        %v853 = vpop.f32.mrb[0].mxu0
        %v854 = vpop.f32.mrb[0].mxu0
        %v855 = vadd.f32 %v742, %v854
        %v856 = vpop.f32.mrb[0].mxu0
        %857 = vmatprep.mubr.bf16.mxu0 0
        %858 = vmatmul.mubr.bf16.gmra.mrb[0].mxu0 %v505
        %v859 = vpop.f32.mrb[0].mxu0
        %v860 = vadd.f32 %v747, %v859
        %v861 = vpop.f32.mrb[0].mxu0
        %v862 = vpop.f32.mrb[0].mxu0
        %v863 = vadd.f32 %v750, %v862
        %v864 = vpop.f32.mrb[0].mxu0
        %865 = vmatprep.mubr.bf16.mxu0 0
        %866 = vmatmul.mubr.bf16.gmra.mrb[0].mxu0 %v508
        %v867 = vpop.f32.mrb[0].mxu0
        %v868 = vadd.f32 %v755, %v867
        %v869 = vpop.f32.mrb[0].mxu0
        %v870 = vpop.f32.mrb[0].mxu0
        %v871 = vadd.f32 %v758, %v870
        %v872 = vpop.f32.mrb[0].mxu0
        %873 = vmatprep.mubr.bf16.mxu0 0
        %874 = vmatmul.mubr.bf16.gmra.mrb[0].mxu0 %v511
        %v875 = vpop.f32.mrb[0].mxu0
        %v876 = vadd.f32 %v763, %v875
        %v877 = vpop.f32.mrb[0].mxu0
        %v878 = vpop.f32.mrb[0].mxu0
        %v879 = vadd.f32 %v766, %v878
        %v880 = vpop.f32.mrb[0].mxu0
        %881 = vmatprep.mubr.bf16.mxu0 0
        %882 = vmatmul.mubr.bf16.gmra.mrb[0].mxu0 %v514
        %v883 = vpop.f32.mrb[0].mxu0
        %v884 = vadd.f32 %v771, %v883
        %v885 = vpop.f32.mrb[0].mxu0
        %v886 = vpop.f32.mrb[0].mxu0
        %v887 = vadd.f32 %v774, %v886
        %v888 = vpop.f32.mrb[0].mxu0
        %889 = vmatprep.mubr.bf16.mxu0 0
        %890 = vmatmul.mubr.bf16.gmra.mrb[0].mxu0 %v517
        %v891 = vpop.f32.mrb[0].mxu0
        %v892 = vadd.f32 %v779, %v891
        %v893 = vpop.f32.mrb[0].mxu0
        %v894 = vpop.f32.mrb[0].mxu0
        %v895 = vadd.f32 %v782, %v894
        %v896 = vpop.f32.mrb[0].mxu0
        %897 = vmatprep.mubr.bf16.mxu0 0
        %898 = vmatmul.mubr.bf16.gmra.mrb[0].mxu0 %v520
        %v899 = vpop.f32.mrb[0].mxu0
        %v900 = vadd.f32 %v787, %v899
        %v901 = vpop.f32.mrb[0].mxu0
        %v902 = vpop.f32.mrb[0].mxu0
        %v903 = vadd.f32 %v790, %v902
        %v904 = vpop.f32.mrb[0].mxu0
        %905 = vmatprep.mubr.bf16.mxu0 0
        %906 = vmatmul.mubr.bf16.gmra.mrb[0].mxu0 %v523
        %v907 = vpop.f32.mrb[0].mxu0
        %v908 = vadd.f32 %v795, %v907
        %v909 = vpop.f32.mrb[0].mxu0
        %v910 = vpop.f32.mrb[0].mxu0
        %v911 = vadd.f32 %v798, %v910
        %v912 = vpop.f32.mrb[0].mxu0
        %913 = vmatprep.mubr.bf16.mxu0 0
        %914 = vmatmul.mubr.bf16.gmra.mrb[0].mxu0 %v526
        %v915 = vpop.f32.mrb[0].mxu0
        %v916 = vadd.f32 %v803, %v915
        %v917 = vpop.f32.mrb[0].mxu0
        %v918 = vpop.f32.mrb[0].mxu0
        %v919 = vadd.f32 %v806, %v918
        %v920 = vpop.f32.mrb[0].mxu0
        %921 = vmatprep.mubr.bf16.mxu0 0
        %922 = vmatmul.mubr.bf16.gmra.mrb[0].mxu0 %v529
        %v923 = vpop.f32.mrb[0].mxu0
        %v924 = vadd.f32 %v811, %v923
        %v925 = vpop.f32.mrb[0].mxu0
        %v926 = vpop.f32.mrb[0].mxu0
        %v927 = vadd.f32 %v814, %v926
        %v928 = vpop.f32.mrb[0].mxu0
        %929 = vdwg.mxu0
        %v930 = vadd.f32 %v292, %v852
        %v931 = vadd.f32 %v293, %v855
        %v932 = vadd.f32 %v294, %v860
        %v933 = vadd.f32 %v295, %v863
        %v934 = vadd.f32 %v296, %v868
        %v935 = vadd.f32 %v297, %v871
        %v936 = vadd.f32 %v298, %v876
        %v937 = vadd.f32 %v299, %v879
        %v938 = vadd.f32 %v300, %v884
        %v939 = vadd.f32 %v301, %v887
        %v940 = vadd.f32 %v302, %v892
        %v941 = vadd.f32 %v303, %v895
        %v942 = vadd.f32 %v304, %v900
        %v943 = vadd.f32 %v305, %v903
        %v944 = vadd.f32 %v306, %v908
        %v945 = vadd.f32 %v307, %v911
        %v946 = vadd.f32 %v308, %v916
        %v947 = vadd.f32 %v309, %v919
        %v948 = vadd.f32 %v310, %v924
        %v949 = vadd.f32 %v311, %v927
        %950 = vst [vmem:[#allocation2] sm:$0xff] %v930
        %951 = vst [vmem:[#allocation2 + $0x8] sm:$0xff] %v931
        %952 = vst [vmem:[#allocation2 + $0x10] sm:$0xff] %v932
        %953 = vst [vmem:[#allocation2 + $0x18] sm:$0xff] %v933
        %954 = vst [vmem:[#allocation2 + $0x20] sm:$0xff] %v934
        %955 = vst [vmem:[#allocation2 + $0x28] sm:$0xff] %v935
        %956 = vst [vmem:[#allocation2 + $0x30] sm:$0xff] %v936
        %957 = vst [vmem:[#allocation2 + $0x38] sm:$0xff] %v937
        %958 = vst [vmem:[#allocation2 + $0x40] sm:$0xff] %v938
        %959 = vst [vmem:[#allocation2 + $0x48] sm:$0xff] %v939
        %960 = vst [vmem:[#allocation2 + $0x50] sm:$0xff] %v940
        %961 = vst [vmem:[#allocation2 + $0x58] sm:$0xff] %v941
        %962 = vst [vmem:[#allocation2 + $0x60] sm:$0xff] %v942
        %963 = vst [vmem:[#allocation2 + $0x68] sm:$0xff] %v943
        %964 = vst [vmem:[#allocation2 + $0x70] sm:$0xff] %v944
        %965 = vst [vmem:[#allocation2 + $0x78] sm:$0xff] %v945
        %966 = vst [vmem:[#allocation2 + $0x80] sm:$0xff] %v946
        %967 = vst [vmem:[#allocation2 + $0x88] sm:$0xff] %v947
        %968 = vst [vmem:[#allocation2 + $0x90] sm:$0xff] %v948
        %969 = vst [vmem:[#allocation2 + $0x98] sm:$0xff] %v949
        // Predicated region
        $region45: #{tpu_custom_call.1} parent=31 // pred_check
          %p970 = pneg %p261
        $region46: #{tpu_custom_call.1} parent=31 // pred_check_branch
          %972 = sbr.rel (%p970) target = $region48
        $region47: #{tpu_custom_call.1} parent=31 // pred_region
          %v973 = vld [vmem:[#allocation2] sm:$0xff]
          %v974 = vld [vmem:[#allocation2 + $0x8] sm:$0xff]
          %v975 = vld [vmem:[#allocation2 + $0x10] sm:$0xff]
          %v976 = vld [vmem:[#allocation2 + $0x18] sm:$0xff]
          %v977 = vld [vmem:[#allocation2 + $0x20] sm:$0xff]
          %v978 = vld [vmem:[#allocation2 + $0x28] sm:$0xff]
          %v979 = vld [vmem:[#allocation2 + $0x30] sm:$0xff]
          %v980 = vld [vmem:[#allocation2 + $0x38] sm:$0xff]
          %v981 = vld [vmem:[#allocation2 + $0x40] sm:$0xff]
          %v982 = vld [vmem:[#allocation2 + $0x48] sm:$0xff]
          %v983 = vld [vmem:[#allocation2 + $0x50] sm:$0xff]
          %v984 = vld [vmem:[#allocation2 + $0x58] sm:$0xff]
          %v985 = vld [vmem:[#allocation2 + $0x60] sm:$0xff]
          %v986 = vld [vmem:[#allocation2 + $0x68] sm:$0xff]
          %v987 = vld [vmem:[#allocation2 + $0x70] sm:$0xff]
          %v988 = vld [vmem:[#allocation2 + $0x78] sm:$0xff]
          %v989 = vld [vmem:[#allocation2 + $0x80] sm:$0xff]
          %v990 = vld [vmem:[#allocation2 + $0x88] sm:$0xff]
          %v991 = vld [vmem:[#allocation2 + $0x90] sm:$0xff]
          %v992 = vld [vmem:[#allocation2 + $0x98] sm:$0xff]
          %993 = vst [vmem:[%s252] sm:$0xff] %v973
          %994 = vst [vmem:[%s252 + $0x8] sm:$0xff] %v974
          %995 = vst [vmem:[%s252 + $0x10] sm:$0xff] %v975
          %996 = vst [vmem:[%s252 + $0x18] sm:$0xff] %v976
          %997 = vst [vmem:[%s252 + $0x20] sm:$0xff] %v977
          %998 = vst [vmem:[%s252 + $0x28] sm:$0xff] %v978
          %999 = vst [vmem:[%s252 + $0x30] sm:$0xff] %v979
          %1000 = vst [vmem:[%s252 + $0x38] sm:$0xff] %v980
          %1001 = vst [vmem:[%s252 + $0x40] sm:$0xff] %v981
          %1002 = vst [vmem:[%s252 + $0x48] sm:$0xff] %v982
          %1003 = vst [vmem:[%s252 + $0x50] sm:$0xff] %v983
          %1004 = vst [vmem:[%s252 + $0x58] sm:$0xff] %v984
          %1005 = vst [vmem:[%s252 + $0x60] sm:$0xff] %v985
          %1006 = vst [vmem:[%s252 + $0x68] sm:$0xff] %v986
          %1007 = vst [vmem:[%s252 + $0x70] sm:$0xff] %v987
          %1008 = vst [vmem:[%s252 + $0x78] sm:$0xff] %v988
          %1009 = vst [vmem:[%s252 + $0x80] sm:$0xff] %v989
          %1010 = vst [vmem:[%s252 + $0x88] sm:$0xff] %v990
          %1011 = vst [vmem:[%s252 + $0x90] sm:$0xff] %v991
          %1012 = vst [vmem:[%s252 + $0x98] sm:$0xff] %v992
        $region48: #{tpu_custom_call.1} parent=31 // pred_fallthru
          _
        %s1013 = sand.u32 %s132, 1
        %s1014 = scalar_lea.sflag [#allocation5], %s1013
        %s1015 = sand.u32 %s132, 1
        %s1016 = smul.addr %s1015, 160
        %s1017 = scalar_lea.vmem [#allocation8], %s1016
        // Predicated region
        $region49: #{tpu_custom_call.1} parent=31 // pred_check
          %p1018 = pneg %p142
        $region50: #{tpu_custom_call.1} parent=31 // pred_check_branch
          %1020 = sbr.rel (%p1018) target = $region52
        $region51: #{tpu_custom_call.1} parent=31 // pred_region
          %s1021 = smul.u32 20, %s27
          %s1023 = ssub.s32 2560, 2560
          %1024 = vsyncadd %s1014, %s1023
          %s1025 = smul.addr %s1021, 2
          %s1026 = sadd.s32 %s26, %s1025
          %s1027 = smul.addr %s1026, 128
          %s1028 = scalar_lea.hbm %s3, %s1027
          %s1029 = sshll.u32 %s1017, 4
          %s1030 = int_to_ptr.vmem [resolvable:$true] %s1029
          %1035 = dma.vmem_to_hbm [thread:$0]  %s1030, 2560, %s1028, %s1014, 128, 256, 8
        $region52: #{tpu_custom_call.1} parent=31 // pred_fallthru
          _
      $region32: #{tpu_custom_call.1} parent=5 // pred_fallthru
        _
      %p1036 = scmp.le.s32.totalorder 2, %s16
      // Predicated region
      $region53: #{tpu_custom_call.1} parent=5 // pred_check
        %p1037 = pneg %p1036
      $region54: #{tpu_custom_call.1} parent=5 // pred_check_branch
        %1039 = sbr.rel (%p1037) target = $region56
      $region55: #{tpu_custom_call.1} parent=5 // pred_region
        %s1040 = ssub.s32 %s16, 2
        // Predicated region
        $region57: #{tpu_custom_call.1} parent=55 // pred_check
          %p1041 = pneg %p148
        $region58: #{tpu_custom_call.1} parent=55 // pred_check_branch
          %1043 = sbr.rel (%p1041) target = $region60
        $region59: #{tpu_custom_call.1} parent=55 // pred_region
          %s1044 = sand.u32 %s133, 1
          %s1045 = scalar_lea.sflag [#allocation5], %s1044
          %s1046 = sand.u32 %s133, 1
          %s1047 = smul.addr %s1046, 160
          %s1048 = scalar_lea.vmem [#allocation8], %s1047
          %1049 = dma.done %s1045, 2560
        $region60: #{tpu_custom_call.1} parent=55 // pred_fallthru
          _
      $region56: #{tpu_custom_call.1} parent=5 // pred_fallthru
        _
    $region6: #{tpu_custom_call.1} parent=1 // loop_footer
      %s20 = sadd.s32 1, %s16
    $region7: #{tpu_custom_call.1} parent=1 // loop_footer_branch
      %15 = sbr.rel target = $region3
    $region8: #{tpu_custom_call.1} parent=1 // loop_exit
      _
    %1050 = vsyncpa [#allocation4], 1
    %s1051 = scalar_lea.sflag [#allocation4], 1
    %1052 = vsyncpa %s1051, 1
    %1053 = vsyncpa [#allocation7], 1
    %s1054 = scalar_lea.sflag [#allocation7], 1
    %1055 = vsyncpa %s1054, 1
    %1056 = vsyncpa [#allocation5], 1
    %s1057 = scalar_lea.sflag [#allocation5], 1
    %1058 = vsyncpa %s1057, 1

</llo_original>
